<compile_context>
chip_gen: v7x
topology: tpu7x:2x2x1
jax: 0.10.0
libtpu: 0.0.40
codegen_flags: <defaults>
</compile_context>

<pallas_src>
import functools

import jax
import jax.numpy as jnp
from jax.experimental import pallas as pl
from jax.experimental.pallas import tpu as pltpu


def _round_up(x, m):
    return -(-x // m) * m


def _cdiv(a, b):
    return -(-a // b)


def _tpu_params():
    """Per-generation (input tile budget bytes, vmem ceiling bytes, #TensorCores)."""
    kind = ""
    try:
        kind = (jax.devices()[0].device_kind or "").lower()
    except Exception:
        pass
    if "v7" in kind or "7x" in kind:
        # v7x: 64 MiB physical VMEM per TC (32 MiB scoped default), 2 TCs,
        # ~3.2 TB/s HBM -> keep tiles ~12 MiB, footprint well under 32 MiB.
        return 12 << 20, 32 << 20, 1 << 1
    if any(tag in kind for tag in ("v4", "v5", "v6")):
        # 128 MiB physical VMEM: larger buffers, fewer grid steps.
        return 28 << 20, 100 << 20, 1
    # Unknown / older chips (v2/v3 have only 16 MiB VMEM): safe everywhere.
    return 6 << 20, 14 << 20, 1


def _gap_kernel_single(x_ref, o_ref, *, inv_hw):
    # x_ref: (row_tile, hw); o_ref: (1, row_tile) lane-dense.
    s = jnp.sum(x_ref[...], axis=-1, dtype=jnp.float32) * inv_hw
    o_ref[...] = s.astype(o_ref.dtype).reshape(1, -1)


def _gap_kernel_multi(x_ref, o_ref, acc_ref, *, inv_hw, hw, hw_tile, needs_mask):
    # x_ref: (row_tile, hw_tile); o_ref: (1, row_tile); acc_ref: (1, row_tile) f32.
    k = pl.program_id(1)

    @pl.when(k == 0)
    def _():
        acc_ref[...] = jnp.zeros_like(acc_ref)

    x = x_ref[...]
    if needs_mask:
        # Last hw block may extend past H*W; out-of-range lanes hold garbage
        # that would corrupt valid row sums -> zero them.
        lane = jax.lax.broadcasted_iota(jnp.int32, x.shape, 1)
        x = jnp.where(lane < (hw - k * hw_tile), x, jnp.zeros_like(x))

    acc_ref[...] += jnp.sum(x, axis=-1, dtype=jnp.float32).reshape(1, -1)

    @pl.when(k == pl.num_programs(1) - 1)
    def _():
        o_ref[...] = (acc_ref[...] * inv_hw).astype(o_ref.dtype)


def secure_global_average_pooling_2d(x, *, tile_bytes=None):
    """x: (N, C, H, W) -> (N, C, 1, 1); mean over axes (2, 3); dtype preserved."""
    n, c, h, w = x.shape
    rows = n * c
    hw = h * w
    dtype = x.dtype
    itemsize = jnp.dtype(dtype).itemsize
    sublane = max(8, 32 // max(itemsize, 1))  # 8 f32 / 16 bf16 / 32 int8-fp8

    default_tile_bytes, vmem_cap, num_tc = _tpu_params()
    if tile_bytes is None:
        tile_bytes = default_tile_bytes

    # ---- H*W (lane / reduction) tile --------------------------------------
    # Smallest row tile we will ever use: full `rows` when small, else 128
    # (128 keeps the input sublane dim and the lane-dense output block legal).
    min_row_tile = min(_round_up(rows, sublane), 128)

    hw_tile = hw
    needs_mask = False
    if min_row_tile * _round_up(hw, 128) * itemsize > tile_bytes:
        cap = max(128, (tile_bytes // (min_row_tile * itemsize)) // 128 * 128)
        hw_tile = 0
        t = min(cap, (hw // 128) * 128)
        while t >= 128:
            if hw % t == 0:
                hw_tile = t
                break
            t -= 128
        if hw_tile == 0:
            # No multiple-of-128 divisor of H*W: use a non-dividing tile and
            # mask the partial last block in-kernel.
            hw_tile = cap
            needs_mask = True
        if hw_tile >= hw:
            hw_tile, needs_mask = hw, False
    num_k = _cdiv(hw, hw_tile)

    hw_tile_padded = _round_up(hw_tile, 128)
    per_row_bytes = hw_tile_padded * itemsize

    # ---- row (sublane / parallel) tile ------------------------------------
    row_cap = max(min_row_tile, tile_bytes // per_row_bytes)
    if row_cap >= rows:
        row_tile = rows
    else:
        row_tile = max(128, (row_cap // 128) * 128)

    # Dual-TensorCore chips: keep >=2 (preferably even) row tiles so the
    # "parallel" axis shards across both cores.  Single-TC chips skip this.
    if num_tc == 2 and rows >= 256:
        if row_tile >= rows:
            row_tile = _round_up(_cdiv(rows, 2), 128)
        else:
            g = _cdiv(rows, row_tile)
            if g > 1 and g % 2 == 1:
                t = _round_up(_cdiv(rows, g + 1), 128)
                if t >= 128 and _cdiv(rows, t) % 2 == 0:
                    row_tile = t
    row_tile = min(row_tile, rows)
    grid_rows = _cdiv(rows, row_tile)

    # ---- VMEM footprint (with lane/sublane padding) and limit --------------
    in_block_bytes = _round_up(row_tile, sublane) * hw_tile_padded * itemsize
    out_block_bytes = 8 * _round_up(row_tile, 128) * itemsize
    acc_bytes = 8 * _round_up(row_tile, 128) * 4 if num_k > 1 else 0
    footprint = 2 * in_block_bytes + 2 * out_block_bytes + acc_bytes
    vmem_limit = int(min(vmem_cap, max(footprint + (2 << 20), 16 << 20)))

    xf = x.reshape(rows, hw)  # free: (N, C, H, W) is contiguous in H, W.
    inv_hw = 1.0 / float(hw)

    if num_k == 1:
        kernel = functools.partial(_gap_kernel_single, inv_hw=inv_hw)
        grid_spec = pltpu.PrefetchScalarGridSpec(
            num_scalar_prefetch=0,
            grid=(grid_rows,),
            in_specs=[pl.BlockSpec((row_tile, hw), lambda i: (i, 0))],
            out_specs=pl.BlockSpec((1, row_tile), lambda i: (0, i)),
            scratch_shapes=[],
        )
        dim_sem = ("parallel",)
    else:
        kernel = functools.partial(
            _gap_kernel_multi, inv_hw=inv_hw, hw=hw, hw_tile=hw_tile,
            needs_mask=needs_mask)
        grid_spec = pltpu.PrefetchScalarGridSpec(
            num_scalar_prefetch=0,
            grid=(grid_rows, num_k),
            in_specs=[pl.BlockSpec((row_tile, hw_tile), lambda i, k: (i, k))],
            out_specs=pl.BlockSpec((1, row_tile), lambda i, k: (0, i)),
            scratch_shapes=[pltpu.VMEM((1, row_tile), jnp.float32)],
        )
        dim_sem = ("parallel", "arbitrary")

    out = pl.pallas_call(
        kernel,
        out_shape=jax.ShapeDtypeStruct((1, rows), dtype),
        grid_spec=grid_spec,
        compiler_params=pltpu.CompilerParams(
            dimension_semantics=dim_sem,
            vmem_limit_bytes=vmem_limit,
        ),
        cost_estimate=pl.CostEstimate(
            flops=rows * hw,
            transcendentals=0,
            bytes_accessed=rows * hw * itemsize + rows * itemsize,
        ),
    )(xf)

    return out.reshape(n, c, 1, 1)


if __name__ == "__main__":
    key = jax.random.PRNGKey(0)

    # 1) Base case (single block, hw multiple of 128).
    x = jax.random.normal(key, (2, 4, 16, 16), dtype=jnp.float32)
    y = jax.block_until_ready(secure_global_average_pooling_2d(x))
    y_ref = jnp.mean(x, axis=(2, 3), keepdims=True).astype(x.dtype)
    assert y.shape == (2, 4, 1, 1)
    assert y.dtype == x.dtype
    assert jnp.allclose(y, y_ref, atol=1e-5, rtol=1e-5)

    # 2) Non-128-multiple spatial size (full-dim block).
    x2 = jax.random.normal(key, (2, 4, 14, 14), dtype=jnp.float32)
    y2 = jax.block_until_ready(secure_global_average_pooling_2d(x2))
    y2_ref = jnp.mean(x2, axis=(2, 3), keepdims=True).astype(x2.dtype)
    assert jnp.allclose(y2, y2_ref, atol=1e-5, rtol=1e-5)

    # 3) Tiny budget -> HW-split accumulator path (exact 128-divisor, no mask).
    y3 = jax.block_until_ready(
        secure_global_average_pooling_2d(x, tile_bytes=4096))
    assert jnp.allclose(y3, y_ref, atol=1e-5, rtol=1e-5)

    # 4) Tiny budget + non-128-multiple hw -> masked HW-split path.
    y4 = jax.block_until_ready(
        secure_global_average_pooling_2d(x2, tile_bytes=4096))
    assert jnp.allclose(y4, y2_ref, atol=1e-5, rtol=1e-5)

    # 5) Multiple row tiles with a partial (implicitly padded) last row block.
    x5 = jax.random.normal(key, (2, 72, 16, 16), dtype=jnp.float32)
    y5 = jax.block_until_ready(
        secure_global_average_pooling_2d(x5, tile_bytes=128 * 1024))
    y5_ref = jnp.mean(x5, axis=(2, 3), keepdims=True).astype(x5.dtype)
    assert y5.shape == (2, 72, 1, 1)
    assert jnp.allclose(y5, y5_ref, atol=1e-5, rtol=1e-5)

    # 6) bf16 input: dtype preserved, f32 accumulation inside the kernel.
    x6 = jax.random.normal(key, (2, 4, 16, 16), dtype=jnp.bfloat16)
    y6 = jax.block_until_ready(secure_global_average_pooling_2d(x6))
    y6_ref = jnp.mean(x6.astype(jnp.float32), axis=(2, 3),
                      keepdims=True).astype(jnp.bfloat16)
    assert y6.dtype == jnp.bfloat16
    assert jnp.allclose(y6.astype(jnp.float32), y6_ref.astype(jnp.float32),
                        atol=2e-2, rtol=2e-2)

    print("KERNEL_OK")
</pallas_src>

<mosaic_0001>
module attributes {stable_mosaic.version = 11 : i64} {
  func.func @_gap_kernel_single(%arg0: i32, %arg1: memref<8x256xf32, #tpu.memory_space<vmem>>, %arg2: memref<1x8xf32, #tpu.memory_space<vmem>>) attributes {dimension_semantics = [#tpu.dimension_semantics<parallel>], iteration_bounds = array<i64: 1>, scalar_prefetch = 0 : i64, scratch_operands = 0 : i64, tpu.core_type = #tpu.core_type<tc>, window_params = [{transform_indices = @transform_0, window_bounds = array<i64: 8, 256>}, {transform_indices = @transform_1, window_bounds = array<i64: 1, 8>}]} {
    %c0 = arith.constant 0 : index
    %c0_0 = arith.constant 0 : index
    %0 = vector.load %arg1[%c0, %c0_0] : memref<8x256xf32, #tpu.memory_space<vmem>>, vector<8x256xf32>
    %cst = arith.constant dense<0.000000e+00> : vector<8xf32>
    %1 = vector.multi_reduction <add>, %0, %cst [1] : vector<8x256xf32> to vector<8xf32>
    %cst_1 = arith.constant 3.906250e-03 : f32
    %2 = vector.broadcast %cst_1 : f32 to vector<8xf32>
    %3 = arith.mulf %1, %2 : vector<8xf32>
    %4 = vector.shape_cast %3 : vector<8xf32> to vector<1x8xf32>
    %c0_2 = arith.constant 0 : index
    %c0_3 = arith.constant 0 : index
    %5 = vector.load %arg2[%c0_2, %c0_3] : memref<1x8xf32, #tpu.memory_space<vmem>>, vector<1x8xf32>
    tpu.vector_store %arg2[%c0_2, %c0_3], %4 {strides = array<i32>} : memref<1x8xf32, #tpu.memory_space<vmem>>, vector<1x8xf32>,
    return
  }
  func.func @transform_0(%arg0: i32) -> (i32, i32) {
    %c0_i32 = arith.constant 0 : i32
    %c0_i32_0 = arith.constant 0 : i32
    return %arg0, %c0_i32 : i32, i32
  }
  func.func @transform_1(%arg0: i32) -> (i32, i32) {
    %c0_i32 = arith.constant 0 : i32
    %c0_i32_0 = arith.constant 0 : i32
    return %c0_i32, %arg0 : i32, i32
  }
}

</mosaic_0001>

<llo_original>
// kernel: tpu_custom_call.1
$region0: #{tpu_custom_call.1}
  #allocation0 [shape = 'u32[]', space=smem, size = 0x4, offset = 0x4, fixed_abs, tag = 'smem constant byte address 0x4 - core index']
  #allocation1 [shape = 'u32[144,128]{1,0:T(1,128)}', space=vmem, size = 0x12000, scoped, tag = 'internal scratch']
  %s0 = inlined_call_operand.hbm [shape: f32[8,256], index: 0, kind: input, shape index: {}]
  %s1 = inlined_call_operand.hbm [shape: f32[1,8], index: 1, kind: output, shape index: {}]
  %s2 = sld [smem:[#allocation0]]
  $region18: #{tpu_custom_call.1} parent=0
    _
  %s4 = ssub.s32 1, %s2
  %s5 = scalar_select 0, %s4, %s2
  $region1: #{tpu_custom_call.1} parent=0
    #allocation2 [shape = 'u8[8192]{0}', space=vmem, size = 0x2000, scoped, tag = 'input window, operand 0, single buffered']
    #allocation3 [shape = 's32[1]{0}', space=sflag, size = 0x4, scoped, tag = 'scoped memory for tpu_custom_call.1']
    #allocation4 [shape = 's32[1]{0}', space=sflag, size = 0x4, scoped, tag = 'scoped memory for tpu_custom_call.1']
    #allocation5 [shape = 'u8[512]{0}', space=vmem, size = 0x400, scoped, tag = 'output window, operand 0, single buffered']
    %6 = vsyncpa [#allocation3], 0
    %7 = vsyncpa [#allocation4], 0
    // Predicated region
    $region2: #{tpu_custom_call.1} parent=1 // pred_check
      _
    $region3: #{tpu_custom_call.1} parent=1 // pred_check_branch
      %9 = sbr.rel (0) target = $region5
    $region4: #{tpu_custom_call.1} parent=1 // pred_region
      %s11 = ssub.s32 256, 256
      %12 = vsyncadd [#allocation3], %s11
      %s14 = sshll.u32 [#allocation2], 4
      %s15 = int_to_ptr.vmem [resolvable:$true] %s14
      %17 = dma.hbm_to_vmem [thread:$0]  %s0, 256, %s15, [#allocation3]
    $region5: #{tpu_custom_call.1} parent=1 // pred_fallthru
      _
    // Predicated region
    $region6: #{tpu_custom_call.1} parent=1 // pred_check
      _
    $region7: #{tpu_custom_call.1} parent=1 // pred_check_branch
      %19 = sbr.rel (0) target = $region9
    $region8: #{tpu_custom_call.1} parent=1 // pred_region
      %20 = dma.done [#allocation3], 256
    $region9: #{tpu_custom_call.1} parent=1 // pred_fallthru
      _
    %v21 = vld [vmem:[#allocation2] sm:$0xff]
    %v22 = vld [vmem:[#allocation2 + $0x8] sm:$0xff]
    %v23 = vadd.f32 %v21, %v22
    %24 = vadd.xlane.f32.xlu0 %v23
    %v25 = vpop.xlane.xlu0 %24
    %v26 = vmul.f32 %v25, 0.00390625
    %v28 = vlaneseq
    %v29 = vand.u32 %v28, 127
    %v30 = vlaneseq
    %v31 = vshrl.u32 %v30, 7
    %v32 = vsub.s32 %v29, %v31
    %v33 = vrot.slane %v26, %v32
    %vm35 = vcmask 57344
    %36 = vst.msk [vmem:[#allocation5] sm:$0x1] %vm35, %v33
    // Predicated region
    $region10: #{tpu_custom_call.1} parent=1 // pred_check
      _
    $region11: #{tpu_custom_call.1} parent=1 // pred_check_branch
      %38 = sbr.rel (0) target = $region13
    $region12: #{tpu_custom_call.1} parent=1 // pred_region
      %s40 = ssub.s32 16, 16
      %41 = vsyncadd [#allocation4], %s40
      %s43 = sshll.u32 [#allocation5], 4
      %s44 = int_to_ptr.vmem [resolvable:$true] %s43
      %46 = dma.vmem_to_hbm [thread:$0]  %s44, 16, %s1, [#allocation4]
    $region13: #{tpu_custom_call.1} parent=1 // pred_fallthru
      _
    // Predicated region
    $region14: #{tpu_custom_call.1} parent=1 // pred_check
      _
    $region15: #{tpu_custom_call.1} parent=1 // pred_check_branch
      %48 = sbr.rel (0) target = $region17
    $region16: #{tpu_custom_call.1} parent=1 // pred_region
      %49 = dma.done [#allocation4], 16
    $region17: #{tpu_custom_call.1} parent=1 // pred_fallthru
      _
    %50 = vsyncpa [#allocation3], 1
    %51 = vsyncpa [#allocation4], 1

</llo_original>
